<compile_context>
chip_gen: v5e
topology: v5e:2x2
jax: 0.10.0
libtpu: 0.0.40
codegen_flags: <defaults>
</compile_context>

<pallas_src>
import functools

import jax
import jax.numpy as jnp
from jax.experimental import pallas as pl
from jax.experimental.pallas import tpu as pltpu


# --------------------------------- kernel -----------------------------------
def _downsample_kernel(xk_ref, w_ref, b_ref, o_ref, patch_ref, *, C, We, Ho):
    """One batch image per grid step; 3x3/stride-2 conv as a single im2col MXU dot.

    xk_ref   : (2, 2, 1, C, P)  parity-split padded input, P = (Ho+2)*We, We = Wo+2
                                xk[hp, wp, 0, c, i*We + j] = x_pad[b, c, 2*i+hp, 2*j+wp]
    w_ref    : (C, 9*C)         weight as [c_out, (kh*3 + kw)*C + c_in]
    b_ref    : (C, 1)           bias (broadcast over lanes)
    o_ref    : (1, C, M)        M = Ho*We output pixels; last 2 cols of each output row
                                are padding-only and dropped by the wrapper
    patch_ref: (9*C, M)         VMEM scratch: im2col patch, tap-channels on sublanes,
                                output pixels on lanes
    """
    M = Ho * We
    # Assemble the im2col patch: each tap is a contiguous lane window of a parity plane.
    for kh in range(3):
        hp, dh = kh % 2, kh // 2
        for kw in range(3):
            wp, dw = kw % 2, kw // 2
            t = kh * 3 + kw
            off = dh * We + dw
            patch_ref[t * C:(t + 1) * C, :] = xk_ref[hp, wp, 0, :, off:off + M]
    # Single MXU matmul, K = 9*C, f32 accumulation; lane-dense [C, M] result.
    acc = jnp.dot(w_ref[...], patch_ref[...], preferred_element_type=jnp.float32)
    o_ref[0] = (acc + b_ref[...]).astype(o_ref.dtype)


# -------------------------------- wrapper ------------------------------------
@jax.jit
def downsample(x_nchw, w_oihw, bias):
    """x_nchw: [B, C, H, W]; w_oihw: PyTorch Conv2d weight [C_out, C_in, 3, 3]; bias: [C]."""
    B, C, H, W = x_nchw.shape
    assert H % 2 == 0 and W % 2 == 0, "even spatial dims expected"
    Ho, Wo = H // 2, W // 2
    He, We = Ho + 2, Wo + 2          # per-parity plane extents (conv pad + halo columns)
    P = He * We                      # lanes per parity plane
    M = Ho * We                      # output pixels per image (incl. 2 dropped cols/row)

    # Pad by (1, 3) per spatial dim: 1 is the conv padding; the extra zeros only feed the
    # dropped columns and keep every tap a contiguous lane window of a parity plane.
    x_pad = jnp.pad(x_nchw, ((0, 0), (0, 0), (1, 3), (1, 3)))
    # Row/col parity split — pure reshape/transpose, no duplication:
    #   xk[hp, wp, b, c, i*We + j] = x_pad[b, c, 2*i + hp, 2*j + wp]
    xk = (x_pad.reshape(B, C, He, 2, We, 2)
               .transpose(3, 5, 0, 1, 2, 4)
               .reshape(2, 2, B, C, P))

    # PyTorch Conv2d weight (Cout, Cin, kh, kw) -> im2col matrix [Cout, (kh,kw,Cin)].
    w_mat = jnp.transpose(w_oihw, (0, 2, 3, 1)).reshape(C, 9 * C)
    b_col = bias.reshape(C, 1)

    kernel = functools.partial(_downsample_kernel, C=C, We=We, Ho=Ho)

    out_flat = pl.pallas_call(
        kernel,
        out_shape=jax.ShapeDtypeStruct((B, C, M), x_nchw.dtype),
        grid=(B,),
        in_specs=[
            pl.BlockSpec((2, 2, 1, C, P), lambda b: (0, 0, b, 0, 0)),
            pl.BlockSpec((C, 9 * C), lambda b: (0, 0)),   # weights resident
            pl.BlockSpec((C, 1), lambda b: (0, 0)),       # bias resident
        ],
        out_specs=pl.BlockSpec((1, C, M), lambda b: (b, 0, 0)),
        scratch_shapes=[pltpu.VMEM((9 * C, M), x_nchw.dtype)],
        compiler_params=pltpu.CompilerParams(
            dimension_semantics=("parallel",),
            vmem_limit_bytes=32 * 1024 * 1024),
    )(xk, w_mat, b_col)

    # (B, C, Ho, We) -> drop the 2 padding-only columns per row; already NCHW.
    return out_flat.reshape(B, C, Ho, We)[:, :, :, :Wo]


# ---------------------------- pure-JAX reference -----------------------------
def downsample_ref(x, w, b):
    out = jax.lax.conv_general_dilated(
        x, w, window_strides=(2, 2), padding=((1, 1), (1, 1)),
        dimension_numbers=("NCHW", "OIHW", "NCHW"))
    return out + b.reshape(1, -1, 1, 1)


# ----------------------------------- main ------------------------------------
if __name__ == "__main__":
    key = jax.random.PRNGKey(0)
    k_x, k_w, k_b, k_x2 = jax.random.split(key, 4)

    N_CHANNELS = 32
    B, H, W = 2, 16, 16
    x = jax.random.normal(k_x, (B, N_CHANNELS, H, W), dtype=jnp.float32)

    # PyTorch Conv2d parameter layouts: weight (C_out, C_in, kh, kw), bias (C_out,)
    w = jax.random.normal(k_w, (N_CHANNELS, N_CHANNELS, 3, 3), jnp.float32) * 0.05
    b = jax.random.normal(k_b, (N_CHANNELS,), jnp.float32) * 0.05

    out = jax.block_until_ready(downsample(x, w, b))
    ref = downsample_ref(x, w, b)
    assert out.shape == (B, N_CHANNELS, H // 2, W // 2)
    assert jnp.allclose(out, ref, rtol=1e-4, atol=1e-4), "mismatch vs. reference"

    # Non-square input (regression check for the previous H/W mix-up).
    x2 = jax.random.normal(k_x2, (1, N_CHANNELS, 12, 20), dtype=jnp.float32)
    out2 = jax.block_until_ready(downsample(x2, w, b))
    ref2 = downsample_ref(x2, w, b)
    assert out2.shape == (1, N_CHANNELS, 6, 10)
    assert jnp.allclose(out2, ref2, rtol=1e-4, atol=1e-4), "mismatch vs. reference (non-square)"

    print("KERNEL_OK")
</pallas_src>

<mosaic_0001>
module attributes {stable_mosaic.version = 11 : i64} {
  func.func @_downsample_kernel(%arg0: i32, %arg1: memref<2x2x1x32x100xf32, #tpu.memory_space<vmem>>, %arg2: memref<32x288xf32, #tpu.memory_space<vmem>>, %arg3: memref<32x1xf32, #tpu.memory_space<vmem>>, %arg4: memref<1x32x80xf32, #tpu.memory_space<vmem>>, %arg5: memref<288x80xf32, #tpu.memory_space<vmem>>) attributes {dimension_semantics = [#tpu.dimension_semantics<parallel>], iteration_bounds = array<i64: 2>, scalar_prefetch = 0 : i64, scratch_operands = 1 : i64, tpu.core_type = #tpu.core_type<tc>, window_params = [{transform_indices = @transform_0, window_bounds = array<i64: 2, 2, 1, 32, 100>}, {pipeline_mode = #tpu.pipeline_mode<synchronous>, transform_indices = @transform_1, window_bounds = array<i64: 32, 288>}, {pipeline_mode = #tpu.pipeline_mode<synchronous>, transform_indices = @transform_2, window_bounds = array<i64: 32, 1>}, {transform_indices = @transform_3, window_bounds = array<i64: 1, 32, 80>}]} {
    %c0 = arith.constant 0 : index
    %c0_0 = arith.constant 0 : index
    %c0_1 = arith.constant 0 : index
    %c0_2 = arith.constant 0 : index
    %c0_3 = arith.constant 0 : index
    %0 = vector.load %arg1[%c0, %c0_0, %c0_1, %c0_2, %c0_3] : memref<2x2x1x32x100xf32, #tpu.memory_space<vmem>>, vector<1x1x1x32x80xf32>
    %1 = vector.shape_cast %0 : vector<1x1x1x32x80xf32> to vector<32x80xf32>
    %c0_4 = arith.constant 0 : index
    %c0_5 = arith.constant 0 : index
    %2 = vector.load %arg5[%c0_4, %c0_5] : memref<288x80xf32, #tpu.memory_space<vmem>>, vector<32x80xf32>
    tpu.vector_store %arg5[%c0_4, %c0_5], %1 {strides = array<i32>} : memref<288x80xf32, #tpu.memory_space<vmem>>, vector<32x80xf32>,
    %c0_6 = arith.constant 0 : index
    %c1 = arith.constant 1 : index
    %c0_7 = arith.constant 0 : index
    %c0_8 = arith.constant 0 : index
    %c0_9 = arith.constant 0 : index
    %3 = vector.load %arg1[%c0_6, %c1, %c0_7, %c0_8, %c0_9] : memref<2x2x1x32x100xf32, #tpu.memory_space<vmem>>, vector<1x1x1x32x80xf32>
    %4 = vector.shape_cast %3 : vector<1x1x1x32x80xf32> to vector<32x80xf32>
    %c32 = arith.constant 32 : index
    %c0_10 = arith.constant 0 : index
    %5 = vector.load %arg5[%c32, %c0_10] : memref<288x80xf32, #tpu.memory_space<vmem>>, vector<32x80xf32>
    tpu.vector_store %arg5[%c32, %c0_10], %4 {strides = array<i32>} : memref<288x80xf32, #tpu.memory_space<vmem>>, vector<32x80xf32>,
    %c0_11 = arith.constant 0 : index
    %c0_12 = arith.constant 0 : index
    %c0_13 = arith.constant 0 : index
    %c0_14 = arith.constant 0 : index
    %c1_15 = arith.constant 1 : index
    %6 = vector.load %arg1[%c0_11, %c0_12, %c0_13, %c0_14, %c1_15] : memref<2x2x1x32x100xf32, #tpu.memory_space<vmem>>, vector<1x1x1x32x80xf32>
    %7 = vector.shape_cast %6 : vector<1x1x1x32x80xf32> to vector<32x80xf32>
    %c64 = arith.constant 64 : index
    %c0_16 = arith.constant 0 : index
    %8 = vector.load %arg5[%c64, %c0_16] : memref<288x80xf32, #tpu.memory_space<vmem>>, vector<32x80xf32>
    tpu.vector_store %arg5[%c64, %c0_16], %7 {strides = array<i32>} : memref<288x80xf32, #tpu.memory_space<vmem>>, vector<32x80xf32>,
    %c1_17 = arith.constant 1 : index
    %c0_18 = arith.constant 0 : index
    %c0_19 = arith.constant 0 : index
    %c0_20 = arith.constant 0 : index
    %c0_21 = arith.constant 0 : index
    %9 = vector.load %arg1[%c1_17, %c0_18, %c0_19, %c0_20, %c0_21] : memref<2x2x1x32x100xf32, #tpu.memory_space<vmem>>, vector<1x1x1x32x80xf32>
    %10 = vector.shape_cast %9 : vector<1x1x1x32x80xf32> to vector<32x80xf32>
    %c96 = arith.constant 96 : index
    %c0_22 = arith.constant 0 : index
    %11 = vector.load %arg5[%c96, %c0_22] : memref<288x80xf32, #tpu.memory_space<vmem>>, vector<32x80xf32>
    tpu.vector_store %arg5[%c96, %c0_22], %10 {strides = array<i32>} : memref<288x80xf32, #tpu.memory_space<vmem>>, vector<32x80xf32>,
    %c1_23 = arith.constant 1 : index
    %c1_24 = arith.constant 1 : index
    %c0_25 = arith.constant 0 : index
    %c0_26 = arith.constant 0 : index
    %c0_27 = arith.constant 0 : index
    %12 = vector.load %arg1[%c1_23, %c1_24, %c0_25, %c0_26, %c0_27] : memref<2x2x1x32x100xf32, #tpu.memory_space<vmem>>, vector<1x1x1x32x80xf32>
    %13 = vector.shape_cast %12 : vector<1x1x1x32x80xf32> to vector<32x80xf32>
    %c128 = arith.constant 128 : index
    %c0_28 = arith.constant 0 : index
    %14 = vector.load %arg5[%c128, %c0_28] : memref<288x80xf32, #tpu.memory_space<vmem>>, vector<32x80xf32>
    tpu.vector_store %arg5[%c128, %c0_28], %13 {strides = array<i32>} : memref<288x80xf32, #tpu.memory_space<vmem>>, vector<32x80xf32>,
    %c1_29 = arith.constant 1 : index
    %c0_30 = arith.constant 0 : index
    %c0_31 = arith.constant 0 : index
    %c0_32 = arith.constant 0 : index
    %c1_33 = arith.constant 1 : index
    %15 = vector.load %arg1[%c1_29, %c0_30, %c0_31, %c0_32, %c1_33] : memref<2x2x1x32x100xf32, #tpu.memory_space<vmem>>, vector<1x1x1x32x80xf32>
    %16 = vector.shape_cast %15 : vector<1x1x1x32x80xf32> to vector<32x80xf32>
    %c160 = arith.constant 160 : index
    %c0_34 = arith.constant 0 : index
    %17 = vector.load %arg5[%c160, %c0_34] : memref<288x80xf32, #tpu.memory_space<vmem>>, vector<32x80xf32>
    tpu.vector_store %arg5[%c160, %c0_34], %16 {strides = array<i32>} : memref<288x80xf32, #tpu.memory_space<vmem>>, vector<32x80xf32>,
    %c0_35 = arith.constant 0 : index
    %c0_36 = arith.constant 0 : index
    %c0_37 = arith.constant 0 : index
    %c0_38 = arith.constant 0 : index
    %c10 = arith.constant 10 : index
    %18 = vector.load %arg1[%c0_35, %c0_36, %c0_37, %c0_38, %c10] : memref<2x2x1x32x100xf32, #tpu.memory_space<vmem>>, vector<1x1x1x32x80xf32>
    %19 = vector.shape_cast %18 : vector<1x1x1x32x80xf32> to vector<32x80xf32>
    %c192 = arith.constant 192 : index
    %c0_39 = arith.constant 0 : index
    %20 = vector.load %arg5[%c192, %c0_39] : memref<288x80xf32, #tpu.memory_space<vmem>>, vector<32x80xf32>
    tpu.vector_store %arg5[%c192, %c0_39], %19 {strides = array<i32>} : memref<288x80xf32, #tpu.memory_space<vmem>>, vector<32x80xf32>,
    %c0_40 = arith.constant 0 : index
    %c1_41 = arith.constant 1 : index
    %c0_42 = arith.constant 0 : index
    %c0_43 = arith.constant 0 : index
    %c10_44 = arith.constant 10 : index
    %21 = vector.load %arg1[%c0_40, %c1_41, %c0_42, %c0_43, %c10_44] : memref<2x2x1x32x100xf32, #tpu.memory_space<vmem>>, vector<1x1x1x32x80xf32>
    %22 = vector.shape_cast %21 : vector<1x1x1x32x80xf32> to vector<32x80xf32>
    %c224 = arith.constant 224 : index
    %c0_45 = arith.constant 0 : index
    %23 = vector.load %arg5[%c224, %c0_45] : memref<288x80xf32, #tpu.memory_space<vmem>>, vector<32x80xf32>
    tpu.vector_store %arg5[%c224, %c0_45], %22 {strides = array<i32>} : memref<288x80xf32, #tpu.memory_space<vmem>>, vector<32x80xf32>,
    %c0_46 = arith.constant 0 : index
    %c0_47 = arith.constant 0 : index
    %c0_48 = arith.constant 0 : index
    %c0_49 = arith.constant 0 : index
    %c11 = arith.constant 11 : index
    %24 = vector.load %arg1[%c0_46, %c0_47, %c0_48, %c0_49, %c11] : memref<2x2x1x32x100xf32, #tpu.memory_space<vmem>>, vector<1x1x1x32x80xf32>
    %25 = vector.shape_cast %24 : vector<1x1x1x32x80xf32> to vector<32x80xf32>
    %c256 = arith.constant 256 : index
    %c0_50 = arith.constant 0 : index
    %26 = vector.load %arg5[%c256, %c0_50] : memref<288x80xf32, #tpu.memory_space<vmem>>, vector<32x80xf32>
    tpu.vector_store %arg5[%c256, %c0_50], %25 {strides = array<i32>} : memref<288x80xf32, #tpu.memory_space<vmem>>, vector<32x80xf32>,
    %c0_51 = arith.constant 0 : index
    %c0_52 = arith.constant 0 : index
    %27 = vector.load %arg2[%c0_51, %c0_52] : memref<32x288xf32, #tpu.memory_space<vmem>>, vector<32x288xf32>
    %c0_53 = arith.constant 0 : index
    %c0_54 = arith.constant 0 : index
    %28 = vector.load %arg5[%c0_53, %c0_54] : memref<288x80xf32, #tpu.memory_space<vmem>>, vector<288x80xf32>
    %cst = arith.constant dense<0.000000e+00> : vector<32x80xf32>
    %29 = tpu.matmul %27, %28, %cst {dimension_numbers = #tpu.dot_dimension_numbers<[1], [0], [0], [1], [0, 0, 1, 1], [], []>} : vector<32x288xf32>, vector<288x80xf32>, vector<32x80xf32> -> vector<32x80xf32>
    %c0_55 = arith.constant 0 : index
    %c0_56 = arith.constant 0 : index
    %30 = vector.load %arg3[%c0_55, %c0_56] : memref<32x1xf32, #tpu.memory_space<vmem>>, vector<32x1xf32>
    %31 = vector.broadcast %30 : vector<32x1xf32> to vector<32x80xf32>
    %32 = arith.addf %29, %31 : vector<32x80xf32>
    %c0_57 = arith.constant 0 : index
    %c0_58 = arith.constant 0 : index
    %c0_59 = arith.constant 0 : index
    %33 = vector.load %arg4[%c0_57, %c0_58, %c0_59] : memref<1x32x80xf32, #tpu.memory_space<vmem>>, vector<1x32x80xf32>
    %34 = vector.shape_cast %33 : vector<1x32x80xf32> to vector<32x80xf32>
    %35 = vector.shape_cast %32 : vector<32x80xf32> to vector<1x32x80xf32>
    tpu.vector_store %arg4[%c0_57, %c0_58, %c0_59], %35 {strides = array<i32>} : memref<1x32x80xf32, #tpu.memory_space<vmem>>, vector<1x32x80xf32>,
    return
  }
  func.func @transform_0(%arg0: i32) -> (i32, i32, i32, i32, i32) {
    %c0_i32 = arith.constant 0 : i32
    %c0_i32_0 = arith.constant 0 : i32
    %c0_i32_1 = arith.constant 0 : i32
    %c0_i32_2 = arith.constant 0 : i32
    %c0_i32_3 = arith.constant 0 : i32
    return %c0_i32, %c0_i32_0, %arg0, %c0_i32_1, %c0_i32_2 : i32, i32, i32, i32, i32
  }
  func.func @transform_1(%arg0: i32) -> (i32, i32) {
    %c0_i32 = arith.constant 0 : i32
    %c0_i32_0 = arith.constant 0 : i32
    %c0_i32_1 = arith.constant 0 : i32
    return %c0_i32, %c0_i32_0 : i32, i32
  }
  func.func @transform_2(%arg0: i32) -> (i32, i32) {
    %c0_i32 = arith.constant 0 : i32
    %c0_i32_0 = arith.constant 0 : i32
    %c0_i32_1 = arith.constant 0 : i32
    return %c0_i32, %c0_i32_0 : i32, i32
  }
  func.func @transform_3(%arg0: i32) -> (i32, i32, i32) {
    %c0_i32 = arith.constant 0 : i32
    %c0_i32_0 = arith.constant 0 : i32
    %c0_i32_1 = arith.constant 0 : i32
    return %arg0, %c0_i32, %c0_i32_0 : i32, i32, i32
  }
}

</mosaic_0001>

<llo_original>
// kernel: downsample.1
$region0: #{downsample.1}
  #allocation0 [shape = 'u32[]', space=smem, size = 0x4, offset = 0x4, fixed_abs, tag = 'smem constant byte address 0x4 - core index']
  #allocation1 [shape = 'u32[72,128]{1,0:T(1,128)}', space=vmem, size = 0x9000, scoped, tag = 'internal scratch']
  #allocation2 [shape = 'f32[288,80]{1,0:T(8,128)}', space=vmem, size = 0x24000, scoped, tag = 'scratch operand']
  %s0 = inlined_call_operand.vmem [shape: f32[2,2,2,32,100], index: 0, kind: input, shape index: {}]
  %s1 = inlined_call_operand.vmem [shape: f32[32,288], index: 1, kind: input, shape index: {}]
  %s2 = inlined_call_operand.vmem [shape: f32[32,1], index: 2, kind: input, shape index: {}]
  %s3 = inlined_call_operand.vmem [shape: f32[2,32,80], index: 3, kind: output, shape index: {}]
  %s4 = sld [smem:[#allocation0]]
  $region83: #{downsample.1} parent=0
    _
  %s6 = ssub.s32 1, %s4
  %s7 = scalar_select 0, %s6, %s4
  $region1: #{downsample.1} parent=0
    #allocation3 [shape = 'u8[131072]{0}', space=vmem, size = 0x20000, scoped, tag = 'input window, operand 0']
    loop: start=0, step=1, limit=4
    $region2: #{downsample.1} parent=1 // loop_pre_header
      _
    $region3: #{downsample.1} parent=1 // loop_header
      %s9 = sphi 0, %s13
      %p10 = scmp.ge.s32.totalorder %s9, 4
      %s19 = sphi 0, %s21
      %s22 = sphi 0, %s19
      %s23 = sphi 0, %s22
      %s39 = sphi 0, %s23
      %s43 = sphi 0, %s43
      %s45 = sphi 0, %s43
      %s46 = sphi 0, %s45
      %s60 = sphi 0, %s46
      %s64 = sphi 0, %s64
      %s66 = sphi 0, %s64
      %s67 = sphi 0, %s66
      %s81 = sphi 0, %s67
      %s87 = sphi 0, %s89
      %s90 = sphi 0, %s87
      %s91 = sphi 0, %s90
      %s107 = sphi 0, %s91
    $region4: #{downsample.1} parent=1 // loop_header_branch
      %12 = sbr.rel (%p10) target = $region8
    $region5: #{downsample.1} parent=1 // loop_body
      %s14 = ssub.s32 %s9, 1
      %s15 = ssub.s32 %s9, 2
      %s16 = sadd.s32 %s9, 1
      %s17 = ssub.s32 %s9, %s16
      %p18 = scmp.eq.s32.totalorder %s17, 0
      %s20 = sadd.s32 %s19, 1
      %s21 = scalar_select %p18, %s19, %s20
      %p24 = pneg %p18
      %p25 = scmp.eq.s32.totalorder %s9, 1
      %p26 = por %p24, %p25
      %p27 = scmp.ne.s32.totalorder %s19, %s22
      %p28 = scmp.eq.s32.totalorder %s9, 0
      %p29 = por %p27, %p28
      %p30 = scmp.ne.s32.totalorder %s19, %s22
      %p31 = scmp.eq.s32.totalorder %s14, 1
      %p32 = por %p30, %p31
      %p33 = scmp.ne.s32.totalorder %s22, %s23
      %p34 = scmp.eq.s32.totalorder %s14, 0
      %p35 = por %p33, %p34
      %p36 = scmp.ne.s32.totalorder %s22, %s23
      %p37 = scmp.eq.s32.totalorder %s15, 1
      %p38 = por %p36, %p37
      %p40 = scmp.ne.s32.totalorder %s23, %s39
      %p41 = scmp.eq.s32.totalorder %s15, 0
      %p42 = por %p40, %p41
      %s44 = sadd.s32 %s43, 1
      %p47 = scmp.eq.s32.totalorder %s9, 1
      %p48 = scmp.ne.s32.totalorder %s43, %s45
      %p49 = scmp.eq.s32.totalorder %s9, 0
      %p50 = por %p48, %p49
      %p51 = scmp.ne.s32.totalorder %s43, %s45
      %p52 = scmp.eq.s32.totalorder %s14, 1
      %p53 = por %p51, %p52
      %p54 = scmp.ne.s32.totalorder %s45, %s46
      %p55 = scmp.eq.s32.totalorder %s14, 0
      %p56 = por %p54, %p55
      %p57 = scmp.ne.s32.totalorder %s45, %s46
      %p58 = scmp.eq.s32.totalorder %s15, 1
      %p59 = por %p57, %p58
      %p61 = scmp.ne.s32.totalorder %s46, %s60
      %p62 = scmp.eq.s32.totalorder %s15, 0
      %p63 = por %p61, %p62
      %s65 = sadd.s32 %s64, 1
      %p68 = scmp.eq.s32.totalorder %s9, 1
      %p69 = scmp.ne.s32.totalorder %s64, %s66
      %p70 = scmp.eq.s32.totalorder %s9, 0
      %p71 = por %p69, %p70
      %p72 = scmp.ne.s32.totalorder %s64, %s66
      %p73 = scmp.eq.s32.totalorder %s14, 1
      %p74 = por %p72, %p73
      %p75 = scmp.ne.s32.totalorder %s66, %s67
      %p76 = scmp.eq.s32.totalorder %s14, 0
      %p77 = por %p75, %p76
      %p78 = scmp.ne.s32.totalorder %s66, %s67
      %p79 = scmp.eq.s32.totalorder %s15, 1
      %p80 = por %p78, %p79
      %p82 = scmp.ne.s32.totalorder %s67, %s81
      %p83 = scmp.eq.s32.totalorder %s15, 0
      %p84 = por %p82, %p83
      %s85 = ssub.s32 %s9, %s16
      %p86 = scmp.eq.s32.totalorder %s85, 0
      %s88 = sadd.s32 %s87, 1
      %s89 = scalar_select %p86, %s87, %s88
      %p92 = pneg %p86
      %p93 = scmp.eq.s32.totalorder %s9, 1
      %p94 = por %p92, %p93
      %p95 = scmp.ne.s32.totalorder %s87, %s90
      %p96 = scmp.eq.s32.totalorder %s9, 0
      %p97 = por %p95, %p96
      %p98 = scmp.ne.s32.totalorder %s87, %s90
      %p99 = scmp.eq.s32.totalorder %s14, 1
      %p100 = por %p98, %p99
      %p101 = scmp.ne.s32.totalorder %s90, %s91
      %p102 = scmp.eq.s32.totalorder %s14, 0
      %p103 = por %p101, %p102
      %p104 = scmp.ne.s32.totalorder %s90, %s91
      %p105 = scmp.eq.s32.totalorder %s15, 1
      %p106 = por %p104, %p105
      %p108 = scmp.ne.s32.totalorder %s91, %s107
      %p109 = scmp.eq.s32.totalorder %s15, 0
      %p110 = por %p108, %p109
      %p111 = scmp.le.s32.totalorder 1, %s9
      %p112 = scmp.lt.s32.totalorder %s9, 3
      %p113 = pnand %p111, %p112
      %p114 = pneg %p113
      // Predicated region
      $region9: #{downsample.1} parent=5 // pred_check
        _
      $region10: #{downsample.1} parent=5 // pred_check_branch
        %116 = sbr.rel (%p113) target = $region12
      $region11: #{downsample.1} parent=5 // pred_region
        %s117 = ssub.s32 %s9, 1
        // Predicated region
        $region13: #{downsample.1} parent=11 // pred_check
          %p118 = pneg %p56
        $region14: #{downsample.1} parent=11 // pred_check_branch
          %120 = sbr.rel (%p118) target = $region16
        $region15: #{downsample.1} parent=11 // pred_region
          _
        $region16: #{downsample.1} parent=11 // pred_fallthru
          _
        // Predicated region
        $region17: #{downsample.1} parent=11 // pred_check
          %p121 = pneg %p77
        $region18: #{downsample.1} parent=11 // pred_check_branch
          %123 = sbr.rel (%p121) target = $region20
        $region19: #{downsample.1} parent=11 // pred_region
          _
        $region20: #{downsample.1} parent=11 // pred_fallthru
          _
      $region12: #{downsample.1} parent=5 // pred_fallthru
        _
      %p124 = scmp.lt.s32.totalorder %s9, 2
      // Predicated region
      $region21: #{downsample.1} parent=5 // pred_check
        %p125 = pneg %p124
      $region22: #{downsample.1} parent=5 // pred_check_branch
        %127 = sbr.rel (%p125) target = $region24
      $region23: #{downsample.1} parent=5 // pred_region
        // Predicated region
        $region25: #{downsample.1} parent=23 // pred_check
          %p128 = pneg %p29
        $region26: #{downsample.1} parent=23 // pred_check_branch
          %130 = sbr.rel (%p128) target = $region28
        $region27: #{downsample.1} parent=23 // pred_region
          %s131 = sand.u32 %s19, 1
          %s132 = sand.u32 %s19, 1
          %s133 = smul.addr %s132, 128
          %s134 = scalar_lea.vmem [#allocation3], %s133
          %s135 = smul.addr %s9, 4
          %s136 = smul.addr %s135, 8
          %s137 = scalar_lea.vmem %s0, %s136
          // Predicated region
          $region29: #{downsample.1} parent=27 // pred_check
            _
          $region30: #{downsample.1} parent=27 // pred_check_branch
            %139 = sbr.rel (0) target = $region32
          $region31: #{downsample.1} parent=27 // pred_region
            // Predicated region
            $region33: #{downsample.1} parent=31 // pred_check
              _
            $region34: #{downsample.1} parent=31 // pred_check_branch
              %141 = sbr.rel (0) target = $region36
            $region35: #{downsample.1} parent=31 // pred_region
              // Predicated region
              $region48: #{downsample.1} parent=35 // pred_check
                _
              $region49: #{downsample.1} parent=35 // pred_check_branch
                %187 = sbr.rel (0) target = $region51
              $region50: #{downsample.1} parent=35 // pred_region
                loop: start=0, step=1, limit=1
                $region52: #{downsample.1} parent=50 // loop_pre_header
                  _
                $region53: #{downsample.1} parent=50 // loop_header
                  %s189 = sphi 0, %s193
                  %p190 = scmp.ge.s32.totalorder %s189, 1
                  %s194 = sphi %s137, %s137
                  %s195 = sphi %s134, %s134
                $region54: #{downsample.1} parent=50 // loop_header_branch
                  %192 = sbr.rel (%p190) target = $region58
                $region55: #{downsample.1} parent=50 // loop_body
                  %v196 = vld [vmem:[%s194] sm:$0xff]
                  %197 = vst [vmem:[%s195] sm:$0xff] %v196
                  %v198 = vld [vmem:[%s194 + $0x8] sm:$0xff]
                  %199 = vst [vmem:[%s195 + $0x8] sm:$0xff] %v198
                  %v200 = vld [vmem:[%s194 + $0x10] sm:$0xff]
                  %201 = vst [vmem:[%s195 + $0x10] sm:$0xff] %v200
                  %v202 = vld [vmem:[%s194 + $0x18] sm:$0xff]
                  %203 = vst [vmem:[%s195 + $0x18] sm:$0xff] %v202
                  %v204 = vld [vmem:[%s194 + $0x40] sm:$0xff]
                  %205 = vst [vmem:[%s195 + $0x20] sm:$0xff] %v204
                  %v206 = vld [vmem:[%s194 + $0x48] sm:$0xff]
                  %207 = vst [vmem:[%s195 + $0x28] sm:$0xff] %v206
                  %v208 = vld [vmem:[%s194 + $0x50] sm:$0xff]
                  %209 = vst [vmem:[%s195 + $0x30] sm:$0xff] %v208
                  %v210 = vld [vmem:[%s194 + $0x58] sm:$0xff]
                  %211 = vst [vmem:[%s195 + $0x38] sm:$0xff] %v210
                  %v212 = vld [vmem:[%s194 + $0x80] sm:$0xff]
                  %213 = vst [vmem:[%s195 + $0x40] sm:$0xff] %v212
                  %v214 = vld [vmem:[%s194 + $0x88] sm:$0xff]
                  %215 = vst [vmem:[%s195 + $0x48] sm:$0xff] %v214
                  %v216 = vld [vmem:[%s194 + $0x90] sm:$0xff]
                  %217 = vst [vmem:[%s195 + $0x50] sm:$0xff] %v216
                  %v218 = vld [vmem:[%s194 + $0x98] sm:$0xff]
                  %219 = vst [vmem:[%s195 + $0x58] sm:$0xff] %v218
                  %v220 = vld [vmem:[%s194 + $0xc0] sm:$0xff]
                  %221 = vst [vmem:[%s195 + $0x60] sm:$0xff] %v220
                  %v222 = vld [vmem:[%s194 + $0xc8] sm:$0xff]
                  %223 = vst [vmem:[%s195 + $0x68] sm:$0xff] %v222
                  %v224 = vld [vmem:[%s194 + $0xd0] sm:$0xff]
                  %225 = vst [vmem:[%s195 + $0x70] sm:$0xff] %v224
                  %v226 = vld [vmem:[%s194 + $0xd8] sm:$0xff]
                  %227 = vst [vmem:[%s195 + $0x78] sm:$0xff] %v226
                $region56: #{downsample.1} parent=50 // loop_footer
                  %s193 = sadd.s32 1, %s189
                $region57: #{downsample.1} parent=50 // loop_footer_branch
                  %188 = sbr.rel target = $region53
                $region58: #{downsample.1} parent=50 // loop_exit
                  _
              $region51: #{downsample.1} parent=35 // pred_fallthru
                _
              // Predicated region
              $region59: #{downsample.1} parent=35 // pred_check
                _
              $region60: #{downsample.1} parent=35 // pred_check_branch
                %229 = sbr.rel target = $region62
              $region61: #{downsample.1} parent=35 // pred_region
                _
              $region62: #{downsample.1} parent=35 // pred_fallthru
                _
            $region36: #{downsample.1} parent=31 // pred_fallthru
              _
            // Predicated region
            $region37: #{downsample.1} parent=31 // pred_check
              _
            $region38: #{downsample.1} parent=31 // pred_check_branch
              %143 = sbr.rel target = $region40
            $region39: #{downsample.1} parent=31 // pred_region
              %s145 = ssub.s32 256, 1
              loop: start=0, step=1, limit=1
              $region41: #{downsample.1} parent=39 // loop_pre_header
                _
              $region42: #{downsample.1} parent=39 // loop_header
                %s147 = sphi 0, %s151
                %p148 = scmp.ge.s32.totalorder %s147, 1
                %s152 = sphi %s137, %s137
                %s153 = sphi %s134, %s134
              $region43: #{downsample.1} parent=39 // loop_header_branch
                %150 = sbr.rel (%p148) target = $region47
              $region44: #{downsample.1} parent=39 // loop_body
                %v154 = vld [vmem:[%s152] sm:%s145]
                %155 = vst [vmem:[%s153] sm:%s145] %v154
                %v156 = vld [vmem:[%s152 + $0x8] sm:%s145]
                %157 = vst [vmem:[%s153 + $0x8] sm:%s145] %v156
                %v158 = vld [vmem:[%s152 + $0x10] sm:%s145]
                %159 = vst [vmem:[%s153 + $0x10] sm:%s145] %v158
                %v160 = vld [vmem:[%s152 + $0x18] sm:%s145]
                %161 = vst [vmem:[%s153 + $0x18] sm:%s145] %v160
                %v162 = vld [vmem:[%s152 + $0x40] sm:%s145]
                %163 = vst [vmem:[%s153 + $0x20] sm:%s145] %v162
                %v164 = vld [vmem:[%s152 + $0x48] sm:%s145]
                %165 = vst [vmem:[%s153 + $0x28] sm:%s145] %v164
                %v166 = vld [vmem:[%s152 + $0x50] sm:%s145]
                %167 = vst [vmem:[%s153 + $0x30] sm:%s145] %v166
                %v168 = vld [vmem:[%s152 + $0x58] sm:%s145]
                %169 = vst [vmem:[%s153 + $0x38] sm:%s145] %v168
                %v170 = vld [vmem:[%s152 + $0x80] sm:%s145]
                %171 = vst [vmem:[%s153 + $0x40] sm:%s145] %v170
                %v172 = vld [vmem:[%s152 + $0x88] sm:%s145]
                %173 = vst [vmem:[%s153 + $0x48] sm:%s145] %v172
                %v174 = vld [vmem:[%s152 + $0x90] sm:%s145]
                %175 = vst [vmem:[%s153 + $0x50] sm:%s145] %v174
                %v176 = vld [vmem:[%s152 + $0x98] sm:%s145]
                %177 = vst [vmem:[%s153 + $0x58] sm:%s145] %v176
                %v178 = vld [vmem:[%s152 + $0xc0] sm:%s145]
                %179 = vst [vmem:[%s153 + $0x60] sm:%s145] %v178
                %v180 = vld [vmem:[%s152 + $0xc8] sm:%s145]
                %181 = vst [vmem:[%s153 + $0x68] sm:%s145] %v180
                %v182 = vld [vmem:[%s152 + $0xd0] sm:%s145]
                %183 = vst [vmem:[%s153 + $0x70] sm:%s145] %v182
                %v184 = vld [vmem:[%s152 + $0xd8] sm:%s145]
                %185 = vst [vmem:[%s153 + $0x78] sm:%s145] %v184
              $region45: #{downsample.1} parent=39 // loop_footer
                %s151 = sadd.s32 1, %s147
              $region46: #{downsample.1} parent=39 // loop_footer_branch
                %146 = sbr.rel target = $region42
              $region47: #{downsample.1} parent=39 // loop_exit
                _
            $region40: #{downsample.1} parent=31 // pred_fallthru
              _
          $region32: #{downsample.1} parent=27 // pred_fallthru
            _
          %230 = vnop
        $region28: #{downsample.1} parent=23 // pred_fallthru
          _
      $region24: #{downsample.1} parent=5 // pred_fallthru
        _
      %p231 = scmp.le.s32.totalorder 1, %s9
      %p232 = scmp.lt.s32.totalorder %s9, 3
      %p233 = pnand %p231, %p232
      %p234 = pneg %p233
      // Predicated region
      $region63: #{downsample.1} parent=5 // pred_check
        _
      $region64: #{downsample.1} parent=5 // pred_check_branch
        %236 = sbr.rel (%p233) target = $region66
      $region65: #{downsample.1} parent=5 // pred_region
        %s237 = ssub.s32 %s9, 1
        %s238 = sand.u32 %s22, 1
        %s239 = sand.u32 %s22, 1
        %s240 = smul.addr %s239, 128
        %s241 = scalar_lea.vmem [#allocation3], %s240
        // Predicated region
        $region67: #{downsample.1} parent=65 // pred_check
          %p242 = pneg %p35
        $region68: #{downsample.1} parent=65 // pred_check_branch
          %244 = sbr.rel (%p242) target = $region70
        $region69: #{downsample.1} parent=65 // pred_region
          _
        $region70: #{downsample.1} parent=65 // pred_fallthru
          _
        %s245 = sand.u32 %s22, 1
        %s246 = sand.u32 %s22, 1
        %s247 = smul.addr %s246, 128
        %s248 = scalar_lea.vmem [#allocation3], %s247
        %p249 = pneg %p35
        %p250 = pneg %p32
        %p251 = pneg %p56
        %p252 = pneg %p53
        %p253 = pneg %p77
        %p254 = pneg %p74
        %p255 = pneg %p103
        %p256 = pneg %p100
        %p257 = scmp.lt.s32.totalorder %s14, 1
        %s258 = scalar_select %p257, %s14, 1
        %s259 = smul.addr %s258, 4
        %s260 = smul.addr %s259, 8
        %s261 = scalar_lea.vmem %s3, %s260
        %p262 = scmp.lt.s32.totalorder %s14, 1
        %s263 = scalar_select %p262, %s14, 1
        %s264 = smul.addr %s263, 4
        %s265 = smul.addr %s264, 8
        %s266 = scalar_lea.vmem %s3, %s265
        %v267 = vld [vmem:[%s241] sm:$0xff]
        %v268 = vld [vmem:[%s241 + $0x8] sm:$0xff]
        %v269 = vld [vmem:[%s241 + $0x10] sm:$0xff]
        %v270 = vld [vmem:[%s241 + $0x18] sm:$0xff]
        %vm271 = vcmask 654336
        %272 = vst.msk [vmem:[#allocation2] sm:$0xff] %vm271, %v267
        %273 = vst.msk [vmem:[#allocation2 + $0x8] sm:$0xff] %vm271, %v268
        %274 = vst.msk [vmem:[#allocation2 + $0x10] sm:$0xff] %vm271, %v269
        %275 = vst.msk [vmem:[#allocation2 + $0x18] sm:$0xff] %vm271, %v270
        %s276 = scalar_lea.vmem %s241, 32 [#allocation3]
        %v277 = vld [vmem:[%s276] sm:$0xff]
        %v278 = vld [vmem:[%s276 + $0x8] sm:$0xff]
        %v279 = vld [vmem:[%s276 + $0x10] sm:$0xff]
        %v280 = vld [vmem:[%s276 + $0x18] sm:$0xff]
        %281 = vst.msk [vmem:[#allocation2 + $0x20] sm:$0xff] %vm271, %v277
        %282 = vst.msk [vmem:[#allocation2 + $0x28] sm:$0xff] %vm271, %v278
        %283 = vst.msk [vmem:[#allocation2 + $0x30] sm:$0xff] %vm271, %v279
        %284 = vst.msk [vmem:[#allocation2 + $0x38] sm:$0xff] %vm271, %v280
        %v285 = vld [vmem:[%s241] sm:$0xff]
        %v286 = vld [vmem:[%s241 + $0x8] sm:$0xff]
        %v287 = vld [vmem:[%s241 + $0x10] sm:$0xff]
        %v288 = vld [vmem:[%s241 + $0x18] sm:$0xff]
        %293 = vrot.lane.b32.xlu0 %v285, 127
        %v294 = vpop.permute.xlu0 %293
        %295 = vrot.lane.b32.xlu0 %v286, 127
        %v296 = vpop.permute.xlu0 %295
        %297 = vrot.lane.b32.xlu0 %v287, 127
        %v298 = vpop.permute.xlu0 %297
        %299 = vrot.lane.b32.xlu0 %v288, 127
        %v300 = vpop.permute.xlu0 %299
        %305 = vst.msk [vmem:[#allocation2 + $0x40] sm:$0xff] %vm271, %v294
        %306 = vst.msk [vmem:[#allocation2 + $0x48] sm:$0xff] %vm271, %v296
        %307 = vst.msk [vmem:[#allocation2 + $0x50] sm:$0xff] %vm271, %v298
        %308 = vst.msk [vmem:[#allocation2 + $0x58] sm:$0xff] %vm271, %v300
        %s309 = scalar_lea.vmem %s241, 64 [#allocation3]
        %v310 = vld [vmem:[%s309] sm:$0xff]
        %v311 = vld [vmem:[%s309 + $0x8] sm:$0xff]
        %v312 = vld [vmem:[%s309 + $0x10] sm:$0xff]
        %v313 = vld [vmem:[%s309 + $0x18] sm:$0xff]
        %314 = vst.msk [vmem:[#allocation2 + $0x60] sm:$0xff] %vm271, %v310
        %315 = vst.msk [vmem:[#allocation2 + $0x68] sm:$0xff] %vm271, %v311
        %316 = vst.msk [vmem:[#allocation2 + $0x70] sm:$0xff] %vm271, %v312
        %317 = vst.msk [vmem:[#allocation2 + $0x78] sm:$0xff] %vm271, %v313
        %s318 = scalar_lea.vmem %s241, 96 [#allocation3]
        %v319 = vld [vmem:[%s318] sm:$0xff]
        %v320 = vld [vmem:[%s318 + $0x8] sm:$0xff]
        %v321 = vld [vmem:[%s318 + $0x10] sm:$0xff]
        %v322 = vld [vmem:[%s318 + $0x18] sm:$0xff]
        %323 = vst.msk [vmem:[#allocation2 + $0x80] sm:$0xff] %vm271, %v319
        %324 = vst.msk [vmem:[#allocation2 + $0x88] sm:$0xff] %vm271, %v320
        %325 = vst.msk [vmem:[#allocation2 + $0x90] sm:$0xff] %vm271, %v321
        %326 = vst.msk [vmem:[#allocation2 + $0x98] sm:$0xff] %vm271, %v322
        %v327 = vld [vmem:[%s309] sm:$0xff]
        %v328 = vld [vmem:[%s309 + $0x8] sm:$0xff]
        %v329 = vld [vmem:[%s309 + $0x10] sm:$0xff]
        %v330 = vld [vmem:[%s309 + $0x18] sm:$0xff]
        %335 = vrot.lane.b32.xlu0 %v327, 127
        %v336 = vpop.permute.xlu0 %335
        %337 = vrot.lane.b32.xlu0 %v328, 127
        %v338 = vpop.permute.xlu0 %337
        %339 = vrot.lane.b32.xlu0 %v329, 127
        %v340 = vpop.permute.xlu0 %339
        %341 = vrot.lane.b32.xlu0 %v330, 127
        %v342 = vpop.permute.xlu0 %341
        %347 = vst.msk [vmem:[#allocation2 + $0xa0] sm:$0xff] %vm271, %v336
        %348 = vst.msk [vmem:[#allocation2 + $0xa8] sm:$0xff] %vm271, %v338
        %349 = vst.msk [vmem:[#allocation2 + $0xb0] sm:$0xff] %vm271, %v340
        %350 = vst.msk [vmem:[#allocation2 + $0xb8] sm:$0xff] %vm271, %v342
        %v351 = vld [vmem:[%s241] sm:$0xff]
        %v352 = vld [vmem:[%s241 + $0x8] sm:$0xff]
        %v353 = vld [vmem:[%s241 + $0x10] sm:$0xff]
        %v354 = vld [vmem:[%s241 + $0x18] sm:$0xff]
        %359 = vrot.lane.b32.xlu0 %v351, 118
        %v360 = vpop.permute.xlu0 %359
        %361 = vrot.lane.b32.xlu0 %v352, 118
        %v362 = vpop.permute.xlu0 %361
        %363 = vrot.lane.b32.xlu0 %v353, 118
        %v364 = vpop.permute.xlu0 %363
        %365 = vrot.lane.b32.xlu0 %v354, 118
        %v366 = vpop.permute.xlu0 %365
        %371 = vst.msk [vmem:[#allocation2 + $0xc0] sm:$0xff] %vm271, %v360
        %372 = vst.msk [vmem:[#allocation2 + $0xc8] sm:$0xff] %vm271, %v362
        %373 = vst.msk [vmem:[#allocation2 + $0xd0] sm:$0xff] %vm271, %v364
        %374 = vst.msk [vmem:[#allocation2 + $0xd8] sm:$0xff] %vm271, %v366
        %v375 = vld [vmem:[%s276] sm:$0xff]
        %v376 = vld [vmem:[%s276 + $0x8] sm:$0xff]
        %v377 = vld [vmem:[%s276 + $0x10] sm:$0xff]
        %v378 = vld [vmem:[%s276 + $0x18] sm:$0xff]
        %383 = vrot.lane.b32.xlu0 %v375, 118
        %v384 = vpop.permute.xlu0 %383
        %385 = vrot.lane.b32.xlu0 %v376, 118
        %v386 = vpop.permute.xlu0 %385
        %387 = vrot.lane.b32.xlu0 %v377, 118
        %v388 = vpop.permute.xlu0 %387
        %389 = vrot.lane.b32.xlu0 %v378, 118
        %v390 = vpop.permute.xlu0 %389
        %395 = vst.msk [vmem:[#allocation2 + $0xe0] sm:$0xff] %vm271, %v384
        %396 = vst.msk [vmem:[#allocation2 + $0xe8] sm:$0xff] %vm271, %v386
        %397 = vst.msk [vmem:[#allocation2 + $0xf0] sm:$0xff] %vm271, %v388
        %398 = vst.msk [vmem:[#allocation2 + $0xf8] sm:$0xff] %vm271, %v390
        %v399 = vld [vmem:[%s241] sm:$0xff]
        %v400 = vld [vmem:[%s241 + $0x8] sm:$0xff]
        %v401 = vld [vmem:[%s241 + $0x10] sm:$0xff]
        %v402 = vld [vmem:[%s241 + $0x18] sm:$0xff]
        %407 = vrot.lane.b32.xlu0 %v399, 117
        %v408 = vpop.permute.xlu0 %407
        %409 = vrot.lane.b32.xlu0 %v400, 117
        %v410 = vpop.permute.xlu0 %409
        %411 = vrot.lane.b32.xlu0 %v401, 117
        %v412 = vpop.permute.xlu0 %411
        %413 = vrot.lane.b32.xlu0 %v402, 117
        %v414 = vpop.permute.xlu0 %413
        %419 = vst.msk [vmem:[#allocation2 + $0x100] sm:$0xff] %vm271, %v408
        %420 = vst.msk [vmem:[#allocation2 + $0x108] sm:$0xff] %vm271, %v410
        %421 = vst.msk [vmem:[#allocation2 + $0x110] sm:$0xff] %vm271, %v412
        %422 = vst.msk [vmem:[#allocation2 + $0x118] sm:$0xff] %vm271, %v414
        %v423 = vld [vmem:[%s1] sm:$0xff]
        %v424 = vld [vmem:[%s1 + $0x8] sm:$0xff]
        %v425 = vld [vmem:[%s1 + $0x10] sm:$0xff]
        %v426 = vld [vmem:[%s1 + $0x18] sm:$0xff]
        %v427 = vld [vmem:[%s1 + $0x20] sm:$0xff]
        %v428 = vld [vmem:[%s1 + $0x28] sm:$0xff]
        %v429 = vld [vmem:[%s1 + $0x30] sm:$0xff]
        %v430 = vld [vmem:[%s1 + $0x38] sm:$0xff]
        %v431 = vld [vmem:[%s1 + $0x40] sm:$0xff]
        %v432 = vld [vmem:[%s1 + $0x48] sm:$0xff]
        %v433 = vld [vmem:[%s1 + $0x50] sm:$0xff]
        %v434 = vld [vmem:[%s1 + $0x58] sm:$0xff]
        %v435 = vld [vmem:[#allocation2] sm:$0xff]
        %v436 = vld [vmem:[#allocation2 + $0x8] sm:$0xff]
        %v437 = vld [vmem:[#allocation2 + $0x10] sm:$0xff]
        %v438 = vld [vmem:[#allocation2 + $0x18] sm:$0xff]
        %v439 = vld [vmem:[#allocation2 + $0x20] sm:$0xff]
        %v440 = vld [vmem:[#allocation2 + $0x28] sm:$0xff]
        %v441 = vld [vmem:[#allocation2 + $0x30] sm:$0xff]
        %v442 = vld [vmem:[#allocation2 + $0x38] sm:$0xff]
        %v443 = vld [vmem:[#allocation2 + $0x40] sm:$0xff]
        %v444 = vld [vmem:[#allocation2 + $0x48] sm:$0xff]
        %v445 = vld [vmem:[#allocation2 + $0x50] sm:$0xff]
        %v446 = vld [vmem:[#allocation2 + $0x58] sm:$0xff]
        %v447 = vld [vmem:[#allocation2 + $0x60] sm:$0xff]
        %v448 = vld [vmem:[#allocation2 + $0x68] sm:$0xff]
        %v449 = vld [vmem:[#allocation2 + $0x70] sm:$0xff]
        %v450 = vld [vmem:[#allocation2 + $0x78] sm:$0xff]
        %v451 = vld [vmem:[#allocation2 + $0x80] sm:$0xff]
        %v452 = vld [vmem:[#allocation2 + $0x88] sm:$0xff]
        %v453 = vld [vmem:[#allocation2 + $0x90] sm:$0xff]
        %v454 = vld [vmem:[#allocation2 + $0x98] sm:$0xff]
        %v455 = vld [vmem:[#allocation2 + $0xa0] sm:$0xff]
        %v456 = vld [vmem:[#allocation2 + $0xa8] sm:$0xff]
        %v457 = vld [vmem:[#allocation2 + $0xb0] sm:$0xff]
        %v458 = vld [vmem:[#allocation2 + $0xb8] sm:$0xff]
        %v459 = vld [vmem:[#allocation2 + $0xc0] sm:$0xff]
        %v460 = vld [vmem:[#allocation2 + $0xc8] sm:$0xff]
        %v461 = vld [vmem:[#allocation2 + $0xd0] sm:$0xff]
        %v462 = vld [vmem:[#allocation2 + $0xd8] sm:$0xff]
        %v463 = vld [vmem:[#allocation2 + $0xe0] sm:$0xff]
        %v464 = vld [vmem:[#allocation2 + $0xe8] sm:$0xff]
        %v465 = vld [vmem:[#allocation2 + $0xf0] sm:$0xff]
        %v466 = vld [vmem:[#allocation2 + $0xf8] sm:$0xff]
        %v467 = vld [vmem:[#allocation2 + $0x100] sm:$0xff]
        %v468 = vld [vmem:[#allocation2 + $0x108] sm:$0xff]
        %v469 = vld [vmem:[#allocation2 + $0x110] sm:$0xff]
        %v470 = vld [vmem:[#allocation2 + $0x118] sm:$0xff]
        %v471 = vld [vmem:[%s2] sm:$0xff]
        %v472 = vld [vmem:[%s2 + $0x8] sm:$0xff]
        %v473 = vld [vmem:[%s2 + $0x10] sm:$0xff]
        %v474 = vld [vmem:[%s2 + $0x18] sm:$0xff]
        %476 = vset.pattern.permute.xlu0 0
        %477 = vperm.xlu0 %476, %v471
        %v478 = vpop.permute.xlu0 %477
        %481 = vset.pattern.permute.xlu0 0
        %482 = vperm.xlu0 %481, %v472
        %v483 = vpop.permute.xlu0 %482
        %486 = vset.pattern.permute.xlu0 0
        %487 = vperm.xlu0 %486, %v473
        %v488 = vpop.permute.xlu0 %487
        %491 = vset.pattern.permute.xlu0 0
        %492 = vperm.xlu0 %491, %v474
        %v493 = vpop.permute.xlu0 %492
        %vm495 = vcmask 261120
        %v497 = vsel %vm495, %v425, 0
        %v500 = vsel %vm495, %v428, 0
        %v503 = vsel %vm495, %v431, 0
        %v506 = vsel %vm495, %v434, 0
        %508 = vmatpush.msra.mxu0 %v450
        %509 = vmatpush.msra.mxu0 %v449
        %510 = vmatpush.msra.mxu0 %v448
        %511 = vmatpush.msra.mxu0 %v447
        %512 = vmatpush.msra.mxu0 %v446
        %513 = vmatpush.msra.mxu0 %v445
        %514 = vmatpush.msra.mxu0 %v444
        %515 = vmatpush.msra.mxu0 %v443
        %516 = vmatpush.msra.mxu0 %v442
        %517 = vmatpush.msra.mxu0 %v441
        %518 = vmatpush.msra.mxu0 %v440
        %519 = vmatpush.msra.mxu0 %v439
        %520 = vmatpush.msra.mxu0 %v438
        %521 = vmatpush.msra.mxu0 %v437
        %522 = vmatpush.msra.mxu0 %v436
        %523 = vmatpush.msra.mxu0 %v435
        %524 = vmatmul.f32.gmra.mxu0 %v423
        %v525 = vpop.f32.mrf.mxu0
        %v526 = vadd.f32 %v478, %v525
        %527 = vmatmul.f32.gmra.mxu0 %v426
        %v528 = vpop.f32.mrf.mxu0
        %v529 = vadd.f32 %v483, %v528
        %530 = vmatmul.f32.gmra.mxu0 %v429
        %v531 = vpop.f32.mrf.mxu0
        %v532 = vadd.f32 %v488, %v531
        %533 = vmatmul.f32.gmra.mxu0 %v432
        %v534 = vpop.f32.mrf.mxu0
        %v535 = vadd.f32 %v493, %v534
        %536 = vdwg.mxu0
        %537 = vmatpush.msra.mxu0 %v466
        %538 = vmatpush.msra.mxu0 %v465
        %539 = vmatpush.msra.mxu0 %v464
        %540 = vmatpush.msra.mxu0 %v463
        %541 = vmatpush.msra.mxu0 %v462
        %542 = vmatpush.msra.mxu0 %v461
        %543 = vmatpush.msra.mxu0 %v460
        %544 = vmatpush.msra.mxu0 %v459
        %545 = vmatpush.msra.mxu0 %v458
        %546 = vmatpush.msra.mxu0 %v457
        %547 = vmatpush.msra.mxu0 %v456
        %548 = vmatpush.msra.mxu0 %v455
        %549 = vmatpush.msra.mxu0 %v454
        %550 = vmatpush.msra.mxu0 %v453
        %551 = vmatpush.msra.mxu0 %v452
        %552 = vmatpush.msra.mxu0 %v451
        %553 = vmatmul.f32.gmra.mxu0 %v424
        %v554 = vpop.f32.mrf.mxu0
        %v555 = vadd.f32 %v526, %v554
        %556 = vmatmul.f32.gmra.mxu0 %v427
        %v557 = vpop.f32.mrf.mxu0
        %v558 = vadd.f32 %v529, %v557
        %559 = vmatmul.f32.gmra.mxu0 %v430
        %v560 = vpop.f32.mrf.mxu0
        %v561 = vadd.f32 %v532, %v560
        %562 = vmatmul.f32.gmra.mxu0 %v433
        %v563 = vpop.f32.mrf.mxu0
        %v564 = vadd.f32 %v535, %v563
        %565 = vdwg.mxu0
        %566 = vmatpush.msra.mxu0 0.0
        %567 = vmatpush.msra.mxu0 0.0
        %568 = vmatpush.msra.mxu0 0.0
        %569 = vmatpush.msra.mxu0 0.0
        %570 = vmatpush.msra.mxu0 0.0
        %571 = vmatpush.msra.mxu0 0.0
        %572 = vmatpush.msra.mxu0 0.0
        %573 = vmatpush.msra.mxu0 0.0
        %574 = vmatpush.msra.mxu0 0.0
        %575 = vmatpush.msra.mxu0 0.0
        %576 = vmatpush.msra.mxu0 0.0
        %577 = vmatpush.msra.mxu0 0.0
        %578 = vmatpush.msra.mxu0 %v470
        %579 = vmatpush.msra.mxu0 %v469
        %580 = vmatpush.msra.mxu0 %v468
        %581 = vmatpush.msra.mxu0 %v467
        %582 = vmatmul.f32.gmra.mxu0 %v497
        %v583 = vpop.f32.mrf.mxu0
        %v584 = vadd.f32 %v555, %v583
        %585 = vmatmul.f32.gmra.mxu0 %v500
        %v586 = vpop.f32.mrf.mxu0
        %v587 = vadd.f32 %v558, %v586
        %588 = vmatmul.f32.gmra.mxu0 %v503
        %v589 = vpop.f32.mrf.mxu0
        %v590 = vadd.f32 %v561, %v589
        %591 = vmatmul.f32.gmra.mxu0 %v506
        %v592 = vpop.f32.mrf.mxu0
        %v593 = vadd.f32 %v564, %v592
        %594 = vdwg.mxu0
        %595 = vst.msk [vmem:[%s266] sm:$0xff] %vm271, %v584
        %596 = vst.msk [vmem:[%s266 + $0x8] sm:$0xff] %vm271, %v587
        %597 = vst.msk [vmem:[%s266 + $0x10] sm:$0xff] %vm271, %v590
        %598 = vst.msk [vmem:[%s266 + $0x18] sm:$0xff] %vm271, %v593
        %p599 = scmp.lt.s32.totalorder %s14, 1
        %s600 = scalar_select %p599, %s14, 1
        %s601 = smul.addr %s600, 4
        %s602 = smul.addr %s601, 8
        %s603 = scalar_lea.vmem %s3, %s602
        // Predicated region
        $region71: #{downsample.1} parent=65 // pred_check
          %p604 = pneg %p100
        $region72: #{downsample.1} parent=65 // pred_check_branch
          %606 = sbr.rel (%p604) target = $region74
        $region73: #{downsample.1} parent=65 // pred_region
          _
        $region74: #{downsample.1} parent=65 // pred_fallthru
          _
      $region66: #{downsample.1} parent=5 // pred_fallthru
        _
      %p607 = scmp.le.s32.totalorder 2, %s9
      // Predicated region
      $region75: #{downsample.1} parent=5 // pred_check
        %p608 = pneg %p607
      $region76: #{downsample.1} parent=5 // pred_check_branch
        %610 = sbr.rel (%p608) target = $region78
      $region77: #{downsample.1} parent=5 // pred_region
        %s611 = ssub.s32 %s9, 2
        // Predicated region
        $region79: #{downsample.1} parent=77 // pred_check
          %p612 = pneg %p106
        $region80: #{downsample.1} parent=77 // pred_check_branch
          %614 = sbr.rel (%p612) target = $region82
        $region81: #{downsample.1} parent=77 // pred_region
          %p615 = scmp.lt.s32.totalorder %s15, 1
          %s616 = scalar_select %p615, %s15, 1
          %s617 = smul.addr %s616, 4
          %s618 = smul.addr %s617, 8
          %s619 = scalar_lea.vmem %s3, %s618
        $region82: #{downsample.1} parent=77 // pred_fallthru
          _
      $region78: #{downsample.1} parent=5 // pred_fallthru
        _
    $region6: #{downsample.1} parent=1 // loop_footer
      %s13 = sadd.s32 1, %s9
    $region7: #{downsample.1} parent=1 // loop_footer_branch
      %8 = sbr.rel target = $region3
    $region8: #{downsample.1} parent=1 // loop_exit
      _

</llo_original>
